<compile_context>
chip_gen: v6e
topology: v6e:2x2x1
jax: 0.10.0
libtpu: 0.0.40
codegen_flags: <defaults>
</compile_context>

<pallas_src>
import math

import jax
import jax.numpy as jnp
from jax.experimental import pallas as pl
from jax.experimental.pallas import tpu as pltpu


# ---------------------------------------------------------------------------
# helpers
# ---------------------------------------------------------------------------

def _round_up(a, b):
    return (a + b - 1) // b * b


def _pick_lane_tile(dim_pad, want):
    """Largest multiple of 128 that divides dim_pad and is <= want (dim_pad % 128 == 0)."""
    t = max(128, min(want, dim_pad) // 128 * 128)
    while dim_pad % t:
        t -= 128
    return t


def _pick_row_tile(m, want, mult):
    """Row tile: multiple of the dtype-native sublane count, <= rounded row count."""
    return max(mult, min(want, _round_up(m, mult)) // mult * mult)


def _sublane_multiple(dtype):
    itemsize = jnp.dtype(dtype).itemsize
    if itemsize >= 4:
        return 8
    if itemsize == 2:
        return 16
    return 32


def _default_tiles():
    """Chip-aware default tiles: v5e stays near its balanced roofline, v6e/v7x go bigger."""
    try:
        kind = jax.devices()[0].device_kind.lower()
    except Exception:  # pragma: no cover - defensive
        kind = ""
    if "v5 lite" in kind or "v5e" in kind or "v5lite" in kind:
        return 256, 512, 512
    return 512, 1024, 512


# ---------------------------------------------------------------------------
# kernel
# ---------------------------------------------------------------------------

def _resblock_kernel(x_ref, res_ref, w_ref, b_ref, o_ref, acc_ref):
    """Grid = (M/tm, N/tn, K/tk); K (reduction) is the last ("arbitrary") axis."""
    k = pl.program_id(2)
    nk = pl.num_programs(2)

    # One MXU matmul per K step, f32 accumulation.
    partial = jnp.dot(x_ref[...], w_ref[...], preferred_element_type=jnp.float32)

    @pl.when(k == 0)
    def _():
        acc_ref[...] = jnp.zeros_like(acc_ref)

    @pl.when(k < nk - 1)
    def _():
        acc_ref[...] += partial

    # Fused final step: consume acc + this step's partial directly (no extra
    # (tm, tn) f32 store + reload), then bias + SiLU (EUP) + exact f32 residual add.
    @pl.when(k == nk - 1)
    def _():
        s = acc_ref[...] + partial + b_ref[...].astype(jnp.float32)   # (tm,tn) + (1,tn)
        silu = s * jax.nn.sigmoid(s)
        o_ref[...] = (res_ref[...].astype(jnp.float32) + silu).astype(o_ref.dtype)


# ---------------------------------------------------------------------------
# wrappers
# ---------------------------------------------------------------------------

def prepare_resblock_weights(weight, bias, *, compute_dtype=jnp.bfloat16):
    """Transpose + pad + cast the weight ONCE per weight (hoisted out of forward).

    weight: [H_out, H_in] (torch nn.Linear layout); bias: [H_out].
    Returns (w_t_padded, bias_padded_f32) ready for resblock_forward_prepared.
    """
    H_out, H_in = weight.shape
    H_pad = _round_up(max(H_in, H_out), 128)
    w_t = jnp.pad(weight.T, ((0, H_pad - H_in), (0, H_pad - H_out)))  # [H_in, H_out]
    dt = compute_dtype if compute_dtype is not None else weight.dtype
    w_t = w_t.astype(dt)
    b2 = jnp.pad(bias.astype(jnp.float32), (0, H_pad - H_out)).reshape(1, H_pad)
    return w_t, b2


def resblock_forward_prepared(x, prepared, *, tm=None, tn=None, tk=None):
    """y = x + SiLU(x @ W.T + b) using weights from prepare_resblock_weights."""
    w_t, b2 = prepared
    cdt = w_t.dtype                                    # compute dtype (bf16 by default)
    orig_shape = x.shape
    H = orig_shape[-1]
    H_pad = w_t.shape[0]

    x2 = x.reshape(-1, H)
    M = x2.shape[0]

    # Tile selection (lane-dense, dtype-native sublane multiples).
    dtm, dtn, dtk = _default_tiles()
    tm = tm if tm is not None else dtm
    tn = tn if tn is not None else dtn
    tk = tk if tk is not None else dtk
    tn = _pick_lane_tile(H_pad, tn)
    tk = _pick_lane_tile(H_pad, tk)
    tm = _pick_row_tile(M, tm, _sublane_multiple(cdt))
    M_pad = _round_up(M, tm)

    # v7x megacore: make sure the "parallel" grid has >= 2 tiles when possible.
    if (M_pad // tm) * (H_pad // tn) < 2 and H_pad // 128 >= 2:
        tn = _pick_lane_tile(H_pad, H_pad // 2)

    # One padded+cast copy of x; it serves BOTH the matmul operand and the residual
    # (two BlockSpecs over the same array), so nothing is materialized twice.
    x_p = jnp.pad(x2, ((0, M_pad - M), (0, H_pad - H))).astype(cdt)

    grid = (M_pad // tm, H_pad // tn, H_pad // tk)

    # VMEM budget from the actual tile footprint (double-buffered ins/outs + acc),
    # with headroom, never the full 64 MiB of a v7x TensorCore.
    in_b = jnp.dtype(cdt).itemsize
    out_b = jnp.dtype(x.dtype).itemsize
    footprint = (2 * (tm * tk * in_b            # x matmul tile
                      + tm * tn * in_b          # residual tile
                      + tk * tn * in_b          # W^T tile
                      + tn * 4                  # bias tile
                      + tm * tn * out_b)        # output tile
                 + tm * tn * 4)                 # f32 accumulator scratch
    vmem_limit = int(min(max(32 * 1024 * 1024, 2 * footprint + 8 * 1024 * 1024),
                         56 * 1024 * 1024))

    cost = pl.CostEstimate(
        flops=2 * M_pad * H_pad * H_pad,
        transcendentals=M_pad * H_pad,
        bytes_accessed=(2 * M_pad * H_pad * in_b      # x read for matmul + residual
                        + H_pad * H_pad * in_b        # weight
                        + H_pad * 4                   # bias
                        + M_pad * H_pad * out_b))     # output

    out = pl.pallas_call(
        _resblock_kernel,
        out_shape=jax.ShapeDtypeStruct((M_pad, H_pad), x.dtype),
        grid_spec=pltpu.PrefetchScalarGridSpec(
            num_scalar_prefetch=0,
            grid=grid,
            in_specs=[
                pl.BlockSpec((tm, tk), lambda i, j, k: (i, k)),   # x, matmul A tile
                pl.BlockSpec((tm, tn), lambda i, j, k: (i, j)),   # x, residual tile
                pl.BlockSpec((tk, tn), lambda i, j, k: (k, j)),   # W^T tile
                pl.BlockSpec((1, tn), lambda i, j, k: (0, j)),    # bias tile
            ],
            out_specs=pl.BlockSpec((tm, tn), lambda i, j, k: (i, j)),
            scratch_shapes=[pltpu.VMEM((tm, tn), jnp.float32)],
        ),
        compiler_params=pltpu.CompilerParams(
            dimension_semantics=("parallel", "parallel", "arbitrary"),
            vmem_limit_bytes=vmem_limit,
        ),
        cost_estimate=cost,
    )(x_p, x_p, w_t, b2)

    return out[:M, :H].reshape(orig_shape)


def resblock_forward(x, weight, bias, *, compute_dtype=jnp.bfloat16,
                     tm=None, tn=None, tk=None):
    """Convenience path: prepares the weight inline (prefer prepare_... + ..._prepared
    when the weight is reused across calls)."""
    prepared = prepare_resblock_weights(weight, bias, compute_dtype=compute_dtype)
    return resblock_forward_prepared(x, prepared, tm=tm, tn=tn, tk=tk)


# ---------------------------------------------------------------------------
# reference + self-test
# ---------------------------------------------------------------------------

def _reference(x, weight, bias, compute_dtype=jnp.bfloat16):
    if compute_dtype is not None:
        xc = x.astype(compute_dtype)
        wc = weight.astype(compute_dtype)
    else:
        xc, wc = x, weight
    s = jnp.einsum("...i,oi->...o", xc, wc,
                   preferred_element_type=jnp.float32) + bias.astype(jnp.float32)
    res = xc.astype(jnp.float32)            # residual carried in the compute dtype
    return (res + s * jax.nn.sigmoid(s)).astype(x.dtype)


if __name__ == "__main__":
    key = jax.random.PRNGKey(0)
    batch, seq, hidden = 2, 8, 32
    kx, kb, kw = jax.random.split(key, 3)

    x = jax.random.normal(kx, (batch, seq, hidden), dtype=jnp.float32)

    # Bias: default nn.Linear init (uniform +-1/sqrt(fan_in)), deterministic seed.
    bound = 1.0 / math.sqrt(hidden)
    bias = jax.random.uniform(kb, (hidden,), dtype=jnp.float32,
                              minval=-bound, maxval=bound)

    # --- Test 1: module-faithful init (zero weight), exact f32 path.
    weight0 = jnp.zeros((hidden, hidden), dtype=jnp.float32)
    y = resblock_forward(x, weight0, bias, compute_dtype=None)
    jax.block_until_ready(y)
    y_ref = _reference(x, weight0, bias, compute_dtype=None)
    assert jnp.allclose(y, y_ref, atol=1e-4, rtol=1e-4), "f32/zero-weight mismatch"

    # --- Test 2: random weight, default bf16 MXU path, hoisted (prepared) weights.
    weight = jax.random.normal(kw, (hidden, hidden), dtype=jnp.float32) / math.sqrt(hidden)
    prepared = prepare_resblock_weights(weight, bias)          # once per weight
    y2 = resblock_forward_prepared(x, prepared)
    jax.block_until_ready(y2)
    y2_ref = _reference(x, weight, bias, compute_dtype=jnp.bfloat16)
    assert jnp.allclose(y2, y2_ref, atol=1e-2, rtol=1e-2), "bf16/random-weight mismatch"

    print("KERNEL_OK")
</pallas_src>

<mosaic_0001>
module attributes {stable_mosaic.version = 11 : i64} {
  func.func @_resblock_kernel(%arg0: i32, %arg1: i32, %arg2: i32, %arg3: memref<16x128xf32, #tpu.memory_space<vmem>>, %arg4: memref<16x128xf32, #tpu.memory_space<vmem>>, %arg5: memref<128x128xf32, #tpu.memory_space<vmem>>, %arg6: memref<1x128xf32, #tpu.memory_space<vmem>>, %arg7: memref<16x128xf32, #tpu.memory_space<vmem>>, %arg8: memref<16x128xf32, #tpu.memory_space<vmem>>) attributes {dimension_semantics = [#tpu.dimension_semantics<parallel>, #tpu.dimension_semantics<parallel>, #tpu.dimension_semantics<arbitrary>], iteration_bounds = array<i64: 1, 1, 1>, scalar_prefetch = 0 : i64, scratch_operands = 1 : i64, tpu.core_type = #tpu.core_type<tc>, window_params = [{transform_indices = @transform_0, window_bounds = array<i64: 16, 128>}, {transform_indices = @transform_1, window_bounds = array<i64: 16, 128>}, {transform_indices = @transform_2, window_bounds = array<i64: 128, 128>}, {transform_indices = @transform_3, window_bounds = array<i64: 1, 128>}, {transform_indices = @transform_4, window_bounds = array<i64: 16, 128>}]} {
    %c0 = arith.constant 0 : index
    %c0_0 = arith.constant 0 : index
    %0 = vector.load %arg3[%c0, %c0_0] : memref<16x128xf32, #tpu.memory_space<vmem>>, vector<16x128xf32>
    %c0_1 = arith.constant 0 : index
    %c0_2 = arith.constant 0 : index
    %1 = vector.load %arg5[%c0_1, %c0_2] : memref<128x128xf32, #tpu.memory_space<vmem>>, vector<128x128xf32>
    %cst = arith.constant dense<0.000000e+00> : vector<16x128xf32>
    %2 = tpu.matmul %0, %1, %cst {dimension_numbers = #tpu.dot_dimension_numbers<[1], [0], [0], [1], [0, 0, 1, 1], [], []>} : vector<16x128xf32>, vector<128x128xf32>, vector<16x128xf32> -> vector<16x128xf32>
    %c0_i32 = arith.constant 0 : i32
    %3 = arith.cmpi eq, %arg2, %c0_i32 : i32
    %4 = arith.extui %3 : i1 to i32
    %c0_i32_3 = arith.constant 0 : i32
    %5 = arith.cmpi ne, %4, %c0_i32_3 : i32
    scf.if %5 {
      %cst_8 = arith.constant 0.000000e+00 : f32
      %12 = vector.broadcast %cst_8 : f32 to vector<16x128xf32>
      %c0_9 = arith.constant 0 : index
      %c0_10 = arith.constant 0 : index
      %13 = vector.load %arg8[%c0_9, %c0_10] : memref<16x128xf32, #tpu.memory_space<vmem>>, vector<16x128xf32>
      tpu.vector_store %arg8[%c0_9, %c0_10], %12 {strides = array<i32>} : memref<16x128xf32, #tpu.memory_space<vmem>>, vector<16x128xf32>,
    } else {
    }
    %c0_i32_4 = arith.constant 0 : i32
    %6 = arith.cmpi slt, %arg2, %c0_i32_4 : i32
    %7 = arith.extui %6 : i1 to i32
    %c0_i32_5 = arith.constant 0 : i32
    %8 = arith.cmpi ne, %7, %c0_i32_5 : i32
    scf.if %8 {
      %c0_8 = arith.constant 0 : index
      %c0_9 = arith.constant 0 : index
      %12 = vector.load %arg8[%c0_8, %c0_9] : memref<16x128xf32, #tpu.memory_space<vmem>>, vector<16x128xf32>
      %13 = arith.addf %12, %2 : vector<16x128xf32>
      %c0_10 = arith.constant 0 : index
      %c0_11 = arith.constant 0 : index
      %14 = vector.load %arg8[%c0_10, %c0_11] : memref<16x128xf32, #tpu.memory_space<vmem>>, vector<16x128xf32>
      tpu.vector_store %arg8[%c0_10, %c0_11], %13 {strides = array<i32>} : memref<16x128xf32, #tpu.memory_space<vmem>>, vector<16x128xf32>,
    } else {
    }
    %c0_i32_6 = arith.constant 0 : i32
    %9 = arith.cmpi eq, %arg2, %c0_i32_6 : i32
    %10 = arith.extui %9 : i1 to i32
    %c0_i32_7 = arith.constant 0 : i32
    %11 = arith.cmpi ne, %10, %c0_i32_7 : i32
    scf.if %11 {
      %c0_8 = arith.constant 0 : index
      %c0_9 = arith.constant 0 : index
      %12 = vector.load %arg8[%c0_8, %c0_9] : memref<16x128xf32, #tpu.memory_space<vmem>>, vector<16x128xf32>
      %13 = arith.addf %12, %2 : vector<16x128xf32>
      %c0_10 = arith.constant 0 : index
      %c0_11 = arith.constant 0 : index
      %14 = vector.load %arg6[%c0_10, %c0_11] : memref<1x128xf32, #tpu.memory_space<vmem>>, vector<1x128xf32>
      %15 = vector.broadcast %14 : vector<1x128xf32> to vector<16x128xf32>
      %16 = arith.addf %13, %15 : vector<16x128xf32>
      %17 = arith.negf %16 : vector<16x128xf32>
      %18 = math.exp %17 : vector<16x128xf32>
      %cst_12 = arith.constant 1.000000e+00 : f32
      %19 = vector.broadcast %cst_12 : f32 to vector<16x128xf32>
      %20 = arith.addf %19, %18 : vector<16x128xf32>
      %21 = arith.divf %19, %20 : vector<16x128xf32>
      %22 = arith.mulf %16, %21 : vector<16x128xf32>
      %c0_13 = arith.constant 0 : index
      %c0_14 = arith.constant 0 : index
      %23 = vector.load %arg4[%c0_13, %c0_14] : memref<16x128xf32, #tpu.memory_space<vmem>>, vector<16x128xf32>
      %24 = arith.addf %23, %22 : vector<16x128xf32>
      %c0_15 = arith.constant 0 : index
      %c0_16 = arith.constant 0 : index
      %25 = vector.load %arg7[%c0_15, %c0_16] : memref<16x128xf32, #tpu.memory_space<vmem>>, vector<16x128xf32>
      tpu.vector_store %arg7[%c0_15, %c0_16], %24 {strides = array<i32>} : memref<16x128xf32, #tpu.memory_space<vmem>>, vector<16x128xf32>,
    } else {
    }
    return
  }
  func.func @transform_0(%arg0: i32, %arg1: i32, %arg2: i32) -> (i32, i32) {
    %c0_i32 = arith.constant 0 : i32
    return %arg0, %arg2 : i32, i32
  }
  func.func @transform_1(%arg0: i32, %arg1: i32, %arg2: i32) -> (i32, i32) {
    %c0_i32 = arith.constant 0 : i32
    return %arg0, %arg1 : i32, i32
  }
  func.func @transform_2(%arg0: i32, %arg1: i32, %arg2: i32) -> (i32, i32) {
    %c0_i32 = arith.constant 0 : i32
    return %arg2, %arg1 : i32, i32
  }
  func.func @transform_3(%arg0: i32, %arg1: i32, %arg2: i32) -> (i32, i32) {
    %c0_i32 = arith.constant 0 : i32
    %c0_i32_0 = arith.constant 0 : i32
    return %c0_i32, %arg1 : i32, i32
  }
  func.func @transform_4(%arg0: i32, %arg1: i32, %arg2: i32) -> (i32, i32) {
    %c0_i32 = arith.constant 0 : i32
    return %arg0, %arg1 : i32, i32
  }
}

</mosaic_0001>

<llo_original>
// kernel: tpu_custom_call.1
$region0: #{tpu_custom_call.1}
  #allocation0 [shape = 'u32[]', space=smem, size = 0x4, offset = 0x4, fixed_abs, tag = 'smem constant byte address 0x4 - core index']
  #allocation1 [shape = 'u32[144,128]{1,0:T(1,128)}', space=vmem, size = 0x12000, scoped, tag = 'internal scratch']
  #allocation2 [shape = 'f32[16,128]{1,0:T(8,128)}', space=vmem, size = 0x2000, scoped, tag = 'scratch operand']
  %s0 = inlined_call_operand.hbm [shape: f32[16,128], index: 0, kind: input, shape index: {}]
  %s1 = inlined_call_operand.hbm [shape: f32[16,128], index: 1, kind: input, shape index: {}]
  %s2 = inlined_call_operand.hbm [shape: f32[128,128], index: 2, kind: input, shape index: {}]
  %s3 = inlined_call_operand.vmem [shape: f32[1,128], index: 3, kind: input, shape index: {}]
  %s4 = inlined_call_operand.hbm [shape: f32[16,128], index: 4, kind: output, shape index: {}]
  %s5 = sld [smem:[#allocation0]]
  $region50: #{tpu_custom_call.1} parent=0
    _
  %s7 = ssub.s32 1, %s5
  %s8 = scalar_select 0, %s7, %s5
  $region1: #{tpu_custom_call.1} parent=0
    #allocation3 [shape = 'u8[8192]{0}', space=vmem, size = 0x2000, scoped, tag = 'input window, operand 0, single buffered']
    #allocation4 [shape = 's32[1]{0}', space=sflag, size = 0x4, scoped, tag = 'scoped memory for tpu_custom_call.1']
    #allocation5 [shape = 's32[1]{0}', space=sflag, size = 0x4, scoped, tag = 'scoped memory for tpu_custom_call.1']
    #allocation6 [shape = 'u8[8192]{0}', space=vmem, size = 0x2000, scoped, tag = 'input window, operand 1, single buffered']
    #allocation7 [shape = 's32[1]{0}', space=sflag, size = 0x4, scoped, tag = 'scoped memory for tpu_custom_call.1']
    #allocation8 [shape = 'u8[65536]{0}', space=vmem, size = 0x10000, scoped, tag = 'input window, operand 2, single buffered']
    #allocation9 [shape = 'u8[8192]{0}', space=vmem, size = 0x2000, scoped, tag = 'output window, operand 0, single buffered']
    %9 = vsyncpa [#allocation4], 0
    %10 = vsyncpa [#allocation7], 0
    %11 = vsyncpa [#allocation5], 0
    // Predicated region
    $region2: #{tpu_custom_call.1} parent=1 // pred_check
      _
    $region3: #{tpu_custom_call.1} parent=1 // pred_check_branch
      %13 = sbr.rel (0) target = $region5
    $region4: #{tpu_custom_call.1} parent=1 // pred_region
      %s15 = ssub.s32 256, 256
      %16 = vsyncadd [#allocation4], %s15
      %s17 = sshll.u32 [#allocation3], 4
      %s18 = int_to_ptr.vmem [resolvable:$true] %s17
      %23 = dma.hbm_to_vmem [thread:$0]  %s0, 256, %s18, [#allocation4], 128, 128, 8
    $region5: #{tpu_custom_call.1} parent=1 // pred_fallthru
      _
    // Predicated region
    $region6: #{tpu_custom_call.1} parent=1 // pred_check
      _
    $region7: #{tpu_custom_call.1} parent=1 // pred_check_branch
      %25 = sbr.rel (0) target = $region9
    $region8: #{tpu_custom_call.1} parent=1 // pred_region
      %s27 = ssub.s32 256, 256
      %28 = vsyncadd [#allocation7], %s27
      %s29 = sshll.u32 [#allocation6], 4
      %s30 = int_to_ptr.vmem [resolvable:$true] %s29
      %35 = dma.hbm_to_vmem [thread:$0]  %s1, 256, %s30, [#allocation7], 128, 128, 8
    $region9: #{tpu_custom_call.1} parent=1 // pred_fallthru
      _
    // Predicated region
    $region10: #{tpu_custom_call.1} parent=1 // pred_check
      _
    $region11: #{tpu_custom_call.1} parent=1 // pred_check_branch
      %37 = sbr.rel (0) target = $region13
    $region12: #{tpu_custom_call.1} parent=1 // pred_region
      %s39 = ssub.s32 2048, 2048
      %40 = vsyncadd [#allocation7], %s39
      %s41 = sshll.u32 [#allocation8], 4
      %s42 = int_to_ptr.vmem [resolvable:$true] %s41
      %47 = dma.hbm_to_vmem [thread:$0]  %s2, 2048, %s42, [#allocation7], 128, 128, 8
    $region13: #{tpu_custom_call.1} parent=1 // pred_fallthru
      _
    // Predicated region
    $region14: #{tpu_custom_call.1} parent=1 // pred_check
      _
    $region15: #{tpu_custom_call.1} parent=1 // pred_check_branch
      %49 = sbr.rel (0) target = $region17
    $region16: #{tpu_custom_call.1} parent=1 // pred_region
      _
    $region17: #{tpu_custom_call.1} parent=1 // pred_fallthru
      _
    // Predicated region
    $region18: #{tpu_custom_call.1} parent=1 // pred_check
      _
    $region19: #{tpu_custom_call.1} parent=1 // pred_check_branch
      %51 = sbr.rel (0) target = $region21
    $region20: #{tpu_custom_call.1} parent=1 // pred_region
      %52 = dma.done [#allocation4], 256
    $region21: #{tpu_custom_call.1} parent=1 // pred_fallthru
      _
    // Predicated region
    $region22: #{tpu_custom_call.1} parent=1 // pred_check
      _
    $region23: #{tpu_custom_call.1} parent=1 // pred_check_branch
      %54 = sbr.rel (0) target = $region25
    $region24: #{tpu_custom_call.1} parent=1 // pred_region
      %55 = dma.done [#allocation7], 256
    $region25: #{tpu_custom_call.1} parent=1 // pred_fallthru
      _
    // Predicated region
    $region26: #{tpu_custom_call.1} parent=1 // pred_check
      _
    $region27: #{tpu_custom_call.1} parent=1 // pred_check_branch
      %57 = sbr.rel (0) target = $region29
    $region28: #{tpu_custom_call.1} parent=1 // pred_region
      %58 = dma.done [#allocation7], 2048
    $region29: #{tpu_custom_call.1} parent=1 // pred_fallthru
      _
    %v59 = vld [vmem:[#allocation3] sm:$0xff]
    %v60 = vld [vmem:[#allocation3 + $0x8] sm:$0xff]
    %v61 = vld [vmem:[#allocation8] sm:$0xff]
    %v62 = vld [vmem:[#allocation8 + $0x8] sm:$0xff]
    %v63 = vld [vmem:[#allocation8 + $0x10] sm:$0xff]
    %v64 = vld [vmem:[#allocation8 + $0x18] sm:$0xff]
    %v65 = vld [vmem:[#allocation8 + $0x20] sm:$0xff]
    %v66 = vld [vmem:[#allocation8 + $0x28] sm:$0xff]
    %v67 = vld [vmem:[#allocation8 + $0x30] sm:$0xff]
    %v68 = vld [vmem:[#allocation8 + $0x38] sm:$0xff]
    %v69 = vld [vmem:[#allocation8 + $0x40] sm:$0xff]
    %v70 = vld [vmem:[#allocation8 + $0x48] sm:$0xff]
    %v71 = vld [vmem:[#allocation8 + $0x50] sm:$0xff]
    %v72 = vld [vmem:[#allocation8 + $0x58] sm:$0xff]
    %v73 = vld [vmem:[#allocation8 + $0x60] sm:$0xff]
    %v74 = vld [vmem:[#allocation8 + $0x68] sm:$0xff]
    %v75 = vld [vmem:[#allocation8 + $0x70] sm:$0xff]
    %v76 = vld [vmem:[#allocation8 + $0x78] sm:$0xff]
    %77 = vmatprep.subr.mxu0 0.0
    %78 = vmatpush1.msra.mxu0 %v76
    %79 = vmatprep.subr.mxu0 0.0
    %80 = vmatpush1.msra.mxu0 %v75
    %81 = vmatprep.subr.mxu0 0.0
    %82 = vmatpush1.msra.mxu0 %v74
    %83 = vmatprep.subr.mxu0 0.0
    %84 = vmatpush1.msra.mxu0 %v73
    %85 = vmatprep.subr.mxu0 0.0
    %86 = vmatpush1.msra.mxu0 %v72
    %87 = vmatprep.subr.mxu0 0.0
    %88 = vmatpush1.msra.mxu0 %v71
    %89 = vmatprep.subr.mxu0 0.0
    %90 = vmatpush1.msra.mxu0 %v70
    %91 = vmatprep.subr.mxu0 0.0
    %92 = vmatpush1.msra.mxu0 %v69
    %93 = vmatprep.subr.mxu0 0.0
    %94 = vmatpush1.msra.mxu0 %v68
    %95 = vmatprep.subr.mxu0 0.0
    %96 = vmatpush1.msra.mxu0 %v67
    %97 = vmatprep.subr.mxu0 0.0
    %98 = vmatpush1.msra.mxu0 %v66
    %99 = vmatprep.subr.mxu0 0.0
    %100 = vmatpush1.msra.mxu0 %v65
    %101 = vmatprep.subr.mxu0 0.0
    %102 = vmatpush1.msra.mxu0 %v64
    %103 = vmatprep.subr.mxu0 0.0
    %104 = vmatpush1.msra.mxu0 %v63
    %105 = vmatprep.subr.mxu0 0.0
    %106 = vmatpush1.msra.mxu0 %v62
    %107 = vmatprep.subr.mxu0 0.0
    %108 = vmatpush1.msra.mxu0 %v61
    %109 = vmatprep.subr.mxu0 0.0
    %110 = vmatpush2.msra.mxu0 0.0
    %111 = vmatprep.subr.mxu0 0.0
    %112 = vmatpush2.msra.mxu0 0.0
    %113 = vmatprep.subr.mxu0 0.0
    %114 = vmatpush2.msra.mxu0 0.0
    %115 = vmatprep.subr.mxu0 0.0
    %116 = vmatpush2.msra.mxu0 0.0
    %117 = vmatprep.subr.mxu0 0.0
    %118 = vmatpush2.msra.mxu0 0.0
    %119 = vmatprep.subr.mxu0 0.0
    %120 = vmatpush2.msra.mxu0 0.0
    %121 = vmatprep.subr.mxu0 0.0
    %122 = vmatpush2.msra.mxu0 0.0
    %123 = vmatprep.subr.mxu0 0.0
    %124 = vmatpush2.msra.mxu0 0.0
    %125 = vmatprep.subr.mxu0 0.0
    %126 = vmatpush2.msra.mxu0 0.0
    %127 = vmatprep.subr.mxu0 0.0
    %128 = vmatpush2.msra.mxu0 0.0
    %129 = vmatprep.subr.mxu0 0.0
    %130 = vmatpush2.msra.mxu0 0.0
    %131 = vmatprep.subr.mxu0 0.0
    %132 = vmatpush2.msra.mxu0 0.0
    %133 = vmatprep.subr.mxu0 0.0
    %134 = vmatpush2.msra.mxu0 0.0
    %135 = vmatprep.subr.mxu0 0.0
    %136 = vmatpush2.msra.mxu0 0.0
    %137 = vmatprep.subr.mxu0 0.0
    %138 = vmatpush2.msra.mxu0 0.0
    %139 = vmatprep.subr.mxu0 0.0
    %140 = vmatpush2.msra.mxu0 0.0
    %141 = vmatprep.mubr.f32.mxu0 0.0
    %142 = vmatmul.mubr.f32.gmra.mxu0 %v59
    %v143 = vpop.f32.mrf.mxu0
    %v144 = vadd.f32 0.0, %v143
    %v145 = vpop.f32.mrf.mxu0
    %146 = vmatprep.mubr.f32.mxu0 0.0
    %147 = vmatmul.mubr.f32.gmra.mxu0 %v60
    %v148 = vpop.f32.mrf.mxu0
    %v149 = vadd.f32 0.0, %v148
    %v150 = vpop.f32.mrf.mxu0
    %151 = vdwg.mxu0
    %p152 = scmp.eq.s32.totalorder 0, 0
    // Predicated region
    $region30: #{tpu_custom_call.1} parent=1 // pred_check
      %p153 = pneg %p152
    $region31: #{tpu_custom_call.1} parent=1 // pred_check_branch
      %155 = sbr.rel (%p153) target = $region33
    $region32: #{tpu_custom_call.1} parent=1 // pred_region
      %156 = vst [vmem:[#allocation2] sm:$0xff] 0.0
      %157 = vst [vmem:[#allocation2 + $0x8] sm:$0xff] 0.0
    $region33: #{tpu_custom_call.1} parent=1 // pred_fallthru
      _
    %p158 = scmp.lt.s32.totalorder 0, 0
    // Predicated region
    $region34: #{tpu_custom_call.1} parent=1 // pred_check
      %p159 = pneg %p158
    $region35: #{tpu_custom_call.1} parent=1 // pred_check_branch
      %161 = sbr.rel (%p159) target = $region37
    $region36: #{tpu_custom_call.1} parent=1 // pred_region
      %v162 = vld [vmem:[#allocation2] sm:$0xff]
      %v163 = vld [vmem:[#allocation2 + $0x8] sm:$0xff]
      %v164 = vadd.f32 %v162, %v144
      %v165 = vadd.f32 %v163, %v149
      %166 = vst [vmem:[#allocation2] sm:$0xff] %v164
      %167 = vst [vmem:[#allocation2 + $0x8] sm:$0xff] %v165
    $region37: #{tpu_custom_call.1} parent=1 // pred_fallthru
      _
    // Predicated region
    $region38: #{tpu_custom_call.1} parent=1 // pred_check
      %p168 = pneg %p152
    $region39: #{tpu_custom_call.1} parent=1 // pred_check_branch
      %170 = sbr.rel (%p168) target = $region41
    $region40: #{tpu_custom_call.1} parent=1 // pred_region
      %v171 = vld [vmem:[#allocation2] sm:$0xff]
      %v172 = vld [vmem:[#allocation2 + $0x8] sm:$0xff]
      %v173 = vadd.f32 %v171, %v144
      %v174 = vadd.f32 %v172, %v149
      %v175 = vld [vmem:[%s3] sm:$0x1]
      %v177 = vlaneseq
      %v178 = vshrl.u32 %v177, 7
      %v179 = vsub.s32 0, %v178
      %v180 = vrot.slane %v175, %v179
      %v182 = vadd.f32 %v173, %v180
      %v183 = vadd.f32 %v174, %v180
      %v184 = vxor.u32 %v182, 2147483648
      %v185 = vxor.u32 %v183, 2147483648
      %v186 = vmul.f32 %v184, 1.442695
      %v187 = vpow.pop %v186
      %v188 = vmul.f32 %v185, 1.442695
      %v189 = vpow.pop %v188
      %v190 = vadd.f32 %v187, 1.0
      %v191 = vadd.f32 %v189, 1.0
      %v192 = vrcp.pop %v190
      %v193 = vmul.f32 1.0, %v192
      %v194 = vrcp.pop %v191
      %v195 = vmul.f32 1.0, %v194
      %v196 = vmul.f32 %v182, %v193
      %v197 = vmul.f32 %v183, %v195
      %v198 = vld [vmem:[#allocation6] sm:$0xff]
      %v199 = vld [vmem:[#allocation6 + $0x8] sm:$0xff]
      %v200 = vadd.f32 %v198, %v196
      %v201 = vadd.f32 %v199, %v197
      %202 = vst [vmem:[#allocation9] sm:$0xff] %v200
      %203 = vst [vmem:[#allocation9 + $0x8] sm:$0xff] %v201
    $region41: #{tpu_custom_call.1} parent=1 // pred_fallthru
      _
    // Predicated region
    $region42: #{tpu_custom_call.1} parent=1 // pred_check
      _
    $region43: #{tpu_custom_call.1} parent=1 // pred_check_branch
      %205 = sbr.rel (0) target = $region45
    $region44: #{tpu_custom_call.1} parent=1 // pred_region
      %s207 = ssub.s32 256, 256
      %208 = vsyncadd [#allocation5], %s207
      %s209 = sshll.u32 [#allocation9], 4
      %s210 = int_to_ptr.vmem [resolvable:$true] %s209
      %215 = dma.vmem_to_hbm [thread:$0]  %s210, 256, %s4, [#allocation5], 128, 128, 8
    $region45: #{tpu_custom_call.1} parent=1 // pred_fallthru
      _
    // Predicated region
    $region46: #{tpu_custom_call.1} parent=1 // pred_check
      _
    $region47: #{tpu_custom_call.1} parent=1 // pred_check_branch
      %217 = sbr.rel (0) target = $region49
    $region48: #{tpu_custom_call.1} parent=1 // pred_region
      %218 = dma.done [#allocation5], 256
    $region49: #{tpu_custom_call.1} parent=1 // pred_fallthru
      _
    %219 = vsyncpa [#allocation4], 1
    %220 = vsyncpa [#allocation7], 1
    %221 = vsyncpa [#allocation5], 1

</llo_original>
